<compile_context>
chip_gen: v7x
topology: tpu7x:2x2x1
jax: 0.10.0
libtpu: 0.0.40
codegen_flags: <defaults>
</compile_context>

<pallas_src>
import functools

import jax
import jax.numpy as jnp
from jax import lax
from jax.experimental import pallas as pl
from jax.experimental.pallas import tpu as pltpu

_LANE = 128
_SUBLANE = 8


def _dot_sum_kernel(a_ref, b_ref, c_ref, o_ref, *, blk, blocks_total,
                    steps_per_shard, valid_rows):
    """One grid step: fold one (blk, 128) block into this shard's (8,128) acc."""
    shard = pl.program_id(0)
    step = pl.program_id(1)
    block_idx = shard * steps_per_shard + step      # global block this step owns

    @pl.when(step == 0)
    def _init():
        o_ref[...] = jnp.zeros_like(o_ref)

    def fold(masked):
        if blk % _SUBLANE != 0:
            # blk == rows (single full-array block, tiny / perf-irrelevant):
            # whole-block fold, no masking needed (block == full array).
            prod = (b_ref[...].astype(jnp.float32)
                    * (a_ref[...].astype(jnp.float32)
                       + c_ref[...].astype(jnp.float32)))
            o_ref[0, 0:1, :] += jnp.sum(prod, axis=0, keepdims=True)
            return

        groups = blk // _SUBLANE

        def body(g, acc):
            r0 = pl.multiple_of(g * _SUBLANE, _SUBLANE)
            av = a_ref[pl.ds(r0, _SUBLANE), :].astype(jnp.float32)
            bv = b_ref[pl.ds(r0, _SUBLANE), :].astype(jnp.float32)
            cv = c_ref[pl.ds(r0, _SUBLANE), :].astype(jnp.float32)
            contrib = bv * (av + cv)                # (8,128), pure VPU
            if masked:
                row_ids = (block_idx * blk + g * _SUBLANE
                           + lax.broadcasted_iota(jnp.int32, contrib.shape, 0))
                # Select, NOT multiply-by-mask: OOB rows may hold garbage/NaN.
                contrib = jnp.where(row_ids < valid_rows, contrib, 0.0)
            return acc + contrib

        acc = lax.fori_loop(0, groups, body,
                            jnp.zeros((_SUBLANE, _LANE), jnp.float32),
                            unroll=min(groups, 8))
        o_ref[0] += acc

    has_partial = (valid_rows % blk) != 0
    full_blocks = blocks_total - 1 if has_partial else blocks_total

    # Full (unmasked) blocks.  Blocks with block_idx >= blocks_total are
    # phantom steps of the last shard (index_map clamps their DMA in-bounds);
    # they fall through both branches and contribute nothing.
    @pl.when(block_idx < full_blocks)
    def _full():
        fold(masked=False)

    if has_partial:
        @pl.when(block_idx == blocks_total - 1)
        def _partial():
            fold(masked=True)


def toymeta2_forward(tensor_a, tensor_b, tensor_c, *, block_rows=8192,
                     num_shards=2):
    """Pallas TPU implementation of ToyMeta2.forward.

    tensor_a, tensor_b, tensor_c: 1-D arrays of identical length N.
    Returns a scalar float32 equal to dot(a, b) + dot(b, c).
    """
    assert tensor_a.ndim == 1 and tensor_a.shape == tensor_b.shape == tensor_c.shape
    n = tensor_a.shape[0]
    itemsize = jnp.dtype(tensor_a.dtype).itemsize

    rows = n // _LANE
    rem = n - rows * _LANE

    # Ragged tail (< 128 elements): tiny wrapper-side dot, no full-array pad.
    tail = None
    if rem:
        tb = tensor_b[rows * _LANE:].astype(jnp.float32)
        tail = (jnp.dot(tensor_a[rows * _LANE:].astype(jnp.float32), tb)
                + jnp.dot(tb, tensor_c[rows * _LANE:].astype(jnp.float32)))
    if rows == 0:
        return tail

    # dtype-aware minimum sublane tile: 8 rows f32, 16 bf16, 32 int8/fp8.
    min_blk = max(_SUBLANE, 32 // itemsize)
    block_rows = max(min_blk, -(-block_rows // min_blk) * min_blk)
    blk = min(block_rows, rows)                 # == rows (full dim) if smaller

    blocks_total = pl.cdiv(rows, blk)
    steps_per_shard = pl.cdiv(blocks_total, num_shards)

    def view(v):
        # Zero-copy reinterpretation when N is 128-aligned; on the ragged path
        # only the 128-aligned prefix is materialized (no pad of the tail).
        v = v[: rows * _LANE] if rem else v
        return v.reshape(rows, _LANE)

    kernel = functools.partial(
        _dot_sum_kernel, blk=blk, blocks_total=blocks_total,
        steps_per_shard=steps_per_shard, valid_rows=rows)

    def in_map(c, s):
        # Clamp phantom steps of the last shard in-bounds; the kernel skips them.
        return (jnp.minimum(c * steps_per_shard + s, blocks_total - 1), 0)

    vec_spec = pl.BlockSpec((blk, _LANE), in_map)

    # 3 inputs x double buffer, plus headroom; stays below v7x's 64 MiB physical.
    buf_bytes = 3 * 2 * blk * _LANE * itemsize
    vmem_limit = min(max(32 << 20, buf_bytes + (16 << 20)), 56 << 20)

    out = pl.pallas_call(
        kernel,
        out_shape=jax.ShapeDtypeStruct((num_shards, _SUBLANE, _LANE), jnp.float32),
        grid_spec=pltpu.PrefetchScalarGridSpec(
            num_scalar_prefetch=0,
            grid=(num_shards, steps_per_shard),
            in_specs=[vec_spec, vec_spec, vec_spec],
            out_specs=pl.BlockSpec((1, _SUBLANE, _LANE), lambda c, s: (c, 0, 0)),
        ),
        compiler_params=pltpu.CompilerParams(
            dimension_semantics=("parallel", "arbitrary"),
            vmem_limit_bytes=vmem_limit,
        ),
        cost_estimate=pl.CostEstimate(
            flops=3 * rows * _LANE,
            transcendentals=0,
            bytes_accessed=3 * rows * _LANE * itemsize
            + num_shards * _SUBLANE * _LANE * 4,
        ),
    )(view(tensor_a), view(tensor_b), view(tensor_c))

    score = jnp.sum(out)                         # 2*8*128 f32 partials -> scalar
    if tail is not None:
        score = score + tail
    return score


if __name__ == "__main__":
    key = jax.random.PRNGKey(0)

    def make(n, k, dtype=jnp.float32):
        ka, kb, kc = jax.random.split(k, 3)
        return (jax.random.normal(ka, (n,), dtype=jnp.float32).astype(dtype),
                jax.random.normal(kb, (n,), dtype=jnp.float32).astype(dtype),
                jax.random.normal(kc, (n,), dtype=jnp.float32).astype(dtype))

    def ref(a, b, c):
        a32, b32, c32 = (v.astype(jnp.float32) for v in (a, b, c))
        return jnp.dot(a32, b32) + jnp.dot(b32, c32)

    k1, k2, k3, k4 = jax.random.split(key, 4)

    # 1) Two shards, partial last block, phantom-step skip:
    #    rows = 37, blk = 8 -> 5 blocks over a (2, 3) grid.
    a, b, c = make(37 * 128, k1)
    s = jax.block_until_ready(toymeta2_forward(a, b, c, block_rows=8))
    r = ref(a, b, c)
    assert jnp.allclose(s, r, rtol=1e-4, atol=1e-3), (s, r)

    # 2) Zero-copy aligned path, default params (single block per shard).
    a, b, c = make(64 * 128, k2)
    s = jax.block_until_ready(toymeta2_forward(a, b, c))
    r = ref(a, b, c)
    assert jnp.allclose(s, r, rtol=1e-4, atol=1e-3), (s, r)

    # 3) Ragged N: kernel on the 128-aligned prefix + wrapper tail dot
    #    (rows = 7 -> single full-array block fallback path).
    a, b, c = make(1000, k3)
    s = jax.block_until_ready(toymeta2_forward(a, b, c))
    r = ref(a, b, c)
    assert jnp.allclose(s, r, rtol=1e-4, atol=1e-3), (s, r)

    # 4) bf16 inputs: (16,128)-aligned blocks, f32 accumulation in-kernel.
    a, b, c = make(64 * 128, k4, dtype=jnp.bfloat16)
    s = jax.block_until_ready(toymeta2_forward(a, b, c))
    r = ref(a, b, c)
    assert jnp.allclose(s, r, rtol=1e-2, atol=1e-2), (s, r)

    print("KERNEL_OK")
</pallas_src>

<mosaic_0001>
module attributes {stable_mosaic.version = 11 : i64} {
  func.func @_dot_sum_kernel(%arg0: i32, %arg1: i32, %arg2: memref<8x128xf32, #tpu.memory_space<vmem>>, %arg3: memref<8x128xf32, #tpu.memory_space<vmem>>, %arg4: memref<8x128xf32, #tpu.memory_space<vmem>>, %arg5: memref<1x8x128xf32, #tpu.memory_space<vmem>>) attributes {dimension_semantics = [#tpu.dimension_semantics<parallel>, #tpu.dimension_semantics<arbitrary>], iteration_bounds = array<i64: 2, 3>, scalar_prefetch = 0 : i64, scratch_operands = 0 : i64, tpu.core_type = #tpu.core_type<tc>, window_params = [{transform_indices = @transform_0, window_bounds = array<i64: 8, 128>}, {transform_indices = @transform_1, window_bounds = array<i64: 8, 128>}, {transform_indices = @transform_2, window_bounds = array<i64: 8, 128>}, {transform_indices = @transform_3, window_bounds = array<i64: 1, 8, 128>}]} {
    %c3_i32 = arith.constant 3 : i32
    %0 = arith.muli %arg0, %c3_i32 : i32
    %1 = arith.addi %0, %arg1 : i32
    %c0_i32 = arith.constant 0 : i32
    %2 = arith.cmpi eq, %arg1, %c0_i32 : i32
    %3 = arith.extui %2 : i1 to i32
    %c0_i32_0 = arith.constant 0 : i32
    %4 = arith.cmpi ne, %3, %c0_i32_0 : i32
    scf.if %4 {
      %cst = arith.constant 0.000000e+00 : f32
      %11 = vector.broadcast %cst : f32 to vector<1x8x128xf32>
      %c0 = arith.constant 0 : index
      %c0_4 = arith.constant 0 : index
      %c0_5 = arith.constant 0 : index
      %12 = vector.load %arg5[%c0, %c0_4, %c0_5] : memref<1x8x128xf32, #tpu.memory_space<vmem>>, vector<1x8x128xf32>
      tpu.vector_store %arg5[%c0, %c0_4, %c0_5], %11 {strides = array<i32>} : memref<1x8x128xf32, #tpu.memory_space<vmem>>, vector<1x8x128xf32>,
    } else {
    }
    %c4_i32 = arith.constant 4 : i32
    %5 = arith.cmpi slt, %1, %c4_i32 : i32
    %6 = arith.extui %5 : i1 to i32
    %c0_i32_1 = arith.constant 0 : i32
    %7 = arith.cmpi ne, %6, %c0_i32_1 : i32
    scf.if %7 {
      %cst = arith.constant 0.000000e+00 : f32
      %11 = vector.broadcast %cst : f32 to vector<8x128xf32>
      %c0_i32_4 = arith.constant 0 : i32
      %c8_i32 = arith.constant 8 : i32
      %12 = arith.muli %c0_i32_4, %c8_i32 : i32
      %13 = tpu.assume_multiple %12, 8 : i32
      %14 = arith.index_cast %13 : i32 to index
      %c0 = arith.constant 0 : index
      %15 = vector.load %arg2[%14, %c0] : memref<8x128xf32, #tpu.memory_space<vmem>>, vector<8x128xf32>
      %16 = arith.index_cast %13 : i32 to index
      %c0_5 = arith.constant 0 : index
      %17 = vector.load %arg3[%16, %c0_5] : memref<8x128xf32, #tpu.memory_space<vmem>>, vector<8x128xf32>
      %18 = arith.index_cast %13 : i32 to index
      %c0_6 = arith.constant 0 : index
      %19 = vector.load %arg4[%18, %c0_6] : memref<8x128xf32, #tpu.memory_space<vmem>>, vector<8x128xf32>
      %20 = arith.addf %15, %19 : vector<8x128xf32>
      %21 = arith.mulf %17, %20 : vector<8x128xf32>
      %22 = arith.addf %11, %21 : vector<8x128xf32>
      %c1_i32 = arith.constant 1 : i32
      %c0_7 = arith.constant 0 : index
      %c0_8 = arith.constant 0 : index
      %c0_9 = arith.constant 0 : index
      %23 = vector.load %arg5[%c0_7, %c0_8, %c0_9] : memref<1x8x128xf32, #tpu.memory_space<vmem>>, vector<1x8x128xf32>
      %24 = vector.shape_cast %23 : vector<1x8x128xf32> to vector<8x128xf32>
      %25 = arith.addf %24, %22 : vector<8x128xf32>
      %c0_10 = arith.constant 0 : index
      %c0_11 = arith.constant 0 : index
      %c0_12 = arith.constant 0 : index
      %26 = vector.load %arg5[%c0_10, %c0_11, %c0_12] : memref<1x8x128xf32, #tpu.memory_space<vmem>>, vector<1x8x128xf32>
      %27 = vector.shape_cast %26 : vector<1x8x128xf32> to vector<8x128xf32>
      %28 = vector.shape_cast %25 : vector<8x128xf32> to vector<1x8x128xf32>
      tpu.vector_store %arg5[%c0_10, %c0_11, %c0_12], %28 {strides = array<i32>} : memref<1x8x128xf32, #tpu.memory_space<vmem>>, vector<1x8x128xf32>,
    } else {
    }
    %c4_i32_2 = arith.constant 4 : i32
    %8 = arith.cmpi eq, %1, %c4_i32_2 : i32
    %9 = arith.extui %8 : i1 to i32
    %c0_i32_3 = arith.constant 0 : i32
    %10 = arith.cmpi ne, %9, %c0_i32_3 : i32
    scf.if %10 {
      %cst = arith.constant 0.000000e+00 : f32
      %11 = vector.broadcast %cst : f32 to vector<8x128xf32>
      %c0_i32_4 = arith.constant 0 : i32
      %c8_i32 = arith.constant 8 : i32
      %12 = arith.muli %c0_i32_4, %c8_i32 : i32
      %13 = tpu.assume_multiple %12, 8 : i32
      %14 = arith.index_cast %13 : i32 to index
      %c0 = arith.constant 0 : index
      %15 = vector.load %arg2[%14, %c0] : memref<8x128xf32, #tpu.memory_space<vmem>>, vector<8x128xf32>
      %16 = arith.index_cast %13 : i32 to index
      %c0_5 = arith.constant 0 : index
      %17 = vector.load %arg3[%16, %c0_5] : memref<8x128xf32, #tpu.memory_space<vmem>>, vector<8x128xf32>
      %18 = arith.index_cast %13 : i32 to index
      %c0_6 = arith.constant 0 : index
      %19 = vector.load %arg4[%18, %c0_6] : memref<8x128xf32, #tpu.memory_space<vmem>>, vector<8x128xf32>
      %20 = arith.addf %15, %19 : vector<8x128xf32>
      %21 = arith.mulf %17, %20 : vector<8x128xf32>
      %c8_i32_7 = arith.constant 8 : i32
      %22 = arith.muli %1, %c8_i32_7 : i32
      %c8_i32_8 = arith.constant 8 : i32
      %23 = arith.muli %c0_i32_4, %c8_i32_8 : i32
      %24 = arith.addi %22, %23 : i32
      %25 = tpu.iota {dimensions = array<i32: 0>} : vector<8x128xi32>
      %26 = vector.broadcast %24 : i32 to vector<8x128xi32>
      %27 = arith.addi %26, %25 : vector<8x128xi32>
      %c37_i32 = arith.constant 37 : i32
      %28 = vector.broadcast %c37_i32 : i32 to vector<8x128xi32>
      %29 = arith.cmpi slt, %27, %28 : vector<8x128xi32>
      %cst_9 = arith.constant 0.000000e+00 : f32
      %30 = vector.broadcast %cst_9 : f32 to vector<8x128xf32>
      %31 = arith.select %29, %21, %30 : vector<8x128xi1>, vector<8x128xf32>
      %32 = arith.addf %11, %31 : vector<8x128xf32>
      %c1_i32 = arith.constant 1 : i32
      %c0_10 = arith.constant 0 : index
      %c0_11 = arith.constant 0 : index
      %c0_12 = arith.constant 0 : index
      %33 = vector.load %arg5[%c0_10, %c0_11, %c0_12] : memref<1x8x128xf32, #tpu.memory_space<vmem>>, vector<1x8x128xf32>
      %34 = vector.shape_cast %33 : vector<1x8x128xf32> to vector<8x128xf32>
      %35 = arith.addf %34, %32 : vector<8x128xf32>
      %c0_13 = arith.constant 0 : index
      %c0_14 = arith.constant 0 : index
      %c0_15 = arith.constant 0 : index
      %36 = vector.load %arg5[%c0_13, %c0_14, %c0_15] : memref<1x8x128xf32, #tpu.memory_space<vmem>>, vector<1x8x128xf32>
      %37 = vector.shape_cast %36 : vector<1x8x128xf32> to vector<8x128xf32>
      %38 = vector.shape_cast %35 : vector<8x128xf32> to vector<1x8x128xf32>
      tpu.vector_store %arg5[%c0_13, %c0_14, %c0_15], %38 {strides = array<i32>} : memref<1x8x128xf32, #tpu.memory_space<vmem>>, vector<1x8x128xf32>,
    } else {
    }
    return
  }
  func.func @transform_0(%arg0: i32, %arg1: i32) -> (i32, i32) {
    %c3_i32 = arith.constant 3 : i32
    %0 = arith.muli %arg0, %c3_i32 : i32
    %1 = arith.addi %0, %arg1 : i32
    %c4_i32 = arith.constant 4 : i32
    %2 = arith.minsi %1, %c4_i32 : i32
    %c0_i32 = arith.constant 0 : i32
    %c0_i32_0 = arith.constant 0 : i32
    return %2, %c0_i32 : i32, i32
  }
  func.func @transform_1(%arg0: i32, %arg1: i32) -> (i32, i32) {
    %c3_i32 = arith.constant 3 : i32
    %0 = arith.muli %arg0, %c3_i32 : i32
    %1 = arith.addi %0, %arg1 : i32
    %c4_i32 = arith.constant 4 : i32
    %2 = arith.minsi %1, %c4_i32 : i32
    %c0_i32 = arith.constant 0 : i32
    %c0_i32_0 = arith.constant 0 : i32
    return %2, %c0_i32 : i32, i32
  }
  func.func @transform_2(%arg0: i32, %arg1: i32) -> (i32, i32) {
    %c3_i32 = arith.constant 3 : i32
    %0 = arith.muli %arg0, %c3_i32 : i32
    %1 = arith.addi %0, %arg1 : i32
    %c4_i32 = arith.constant 4 : i32
    %2 = arith.minsi %1, %c4_i32 : i32
    %c0_i32 = arith.constant 0 : i32
    %c0_i32_0 = arith.constant 0 : i32
    return %2, %c0_i32 : i32, i32
  }
  func.func @transform_3(%arg0: i32, %arg1: i32) -> (i32, i32, i32) {
    %c0_i32 = arith.constant 0 : i32
    %c0_i32_0 = arith.constant 0 : i32
    %c0_i32_1 = arith.constant 0 : i32
    return %arg0, %c0_i32, %c0_i32_0 : i32, i32, i32
  }
}

</mosaic_0001>

<llo_original>
// kernel: tpu_custom_call.1
$region0: #{tpu_custom_call.1}
  #allocation0 [shape = 'u32[]', space=smem, size = 0x4, offset = 0x4, fixed_abs, tag = 'smem constant byte address 0x4 - core index']
  #allocation1 [shape = 'u32[144,128]{1,0:T(1,128)}', space=vmem, size = 0x12000, scoped, tag = 'internal scratch']
  %s0 = inlined_call_operand.hbm [shape: f32[37,128], index: 0, kind: input, shape index: {}]
  %s1 = inlined_call_operand.hbm [shape: f32[37,128], index: 1, kind: input, shape index: {}]
  %s2 = inlined_call_operand.hbm [shape: f32[37,128], index: 2, kind: input, shape index: {}]
  %s3 = inlined_call_operand.hbm [shape: f32[2,8,128], index: 3, kind: output, shape index: {}]
  %s4 = sld [smem:[#allocation0]]
  $region69: #{tpu_custom_call.1} parent=0
    _
  %s6 = ssub.s32 1, %s4
  %s7 = scalar_select 0, %s6, %s4
  $region1: #{tpu_custom_call.1} parent=0
    #allocation2 [shape = 'u8[8192]{0}', space=vmem, size = 0x2000, scoped, tag = 'input window, operand 0']
    #allocation3 [shape = 's32[2]{0}', space=sflag, size = 0x8, scoped, tag = 'scoped memory for tpu_custom_call.1']
    #allocation4 [shape = 's32[2]{0}', space=sflag, size = 0x8, scoped, tag = 'scoped memory for tpu_custom_call.1']
    #allocation5 [shape = 'u8[8192]{0}', space=vmem, size = 0x2000, scoped, tag = 'input window, operand 1']
    #allocation6 [shape = 's32[2]{0}', space=sflag, size = 0x8, scoped, tag = 'scoped memory for tpu_custom_call.1']
    #allocation7 [shape = 'u8[8192]{0}', space=vmem, size = 0x2000, scoped, tag = 'input window, operand 2']
    #allocation8 [shape = 'u8[8192]{0}', space=vmem, size = 0x2000, scoped, tag = 'output window, operand 0']
    %8 = vsyncpa [#allocation3], 0
    %s9 = scalar_lea.sflag [#allocation3], 1
    %10 = vsyncpa %s9, 0
    %11 = vsyncpa [#allocation6], 0
    %s12 = scalar_lea.sflag [#allocation6], 1
    %13 = vsyncpa %s12, 0
    %14 = vsyncpa [#allocation4], 0
    %s15 = scalar_lea.sflag [#allocation4], 1
    %16 = vsyncpa %s15, 0
    loop: start=0, step=1, limit=8
    $region2: #{tpu_custom_call.1} parent=1 // loop_pre_header
      _
    $region3: #{tpu_custom_call.1} parent=1 // loop_header
      %s18 = sphi 0, %s22
      %p19 = scmp.ge.s32.totalorder %s18, 8
      %s25 = sphi 0, %s37
      %s26 = sphi 0, %s33
      %s27 = sphi 0, %s25
      %s28 = sphi 0, %s26
      %s29 = sphi 0, %s27
      %s30 = sphi 0, %s28
      %s48 = sphi 0, %s50
      %s51 = sphi 0, %s48
      %s52 = sphi 0, %s51
      %s68 = sphi 0, %s52
      %s82 = sphi 0, %s84
      %s85 = sphi 0, %s82
      %s86 = sphi 0, %s85
      %s102 = sphi 0, %s86
      %s116 = sphi 0, %s118
      %s119 = sphi 0, %s116
      %s120 = sphi 0, %s119
      %s136 = sphi 0, %s120
      %s142 = sphi 0, %s144
      %s145 = sphi 0, %s142
      %s146 = sphi 0, %s145
      %s162 = sphi 0, %s146
    $region4: #{tpu_custom_call.1} parent=1 // loop_header_branch
      %21 = sbr.rel (%p19) target = $region8
    $region5: #{tpu_custom_call.1} parent=1 // loop_body
      %s23 = ssub.s32 %s18, 1
      %s24 = ssub.s32 %s18, 2
      %s31 = sadd.s32 1, %s26
      %p32 = scmp.ge.s32.totalorder %s31, 3
      %s33 = scalar_select %p32, 0, %s31
      %s34 = sadd.s32 1, %s25
      %s35 = scalar_select %p32, %s34, %s25
      %p36 = scmp.ge.s32.totalorder %s35, 2
      %s37 = scalar_select %p36, 0, %s35
      %s38 = smul.u32 %s25, 3
      %s39 = sadd.s32 %s38, %s26
      %p40 = scmp.lt.s32.totalorder %s39, 4
      %s41 = scalar_select %p40, %s39, 4
      %s42 = smul.u32 %s37, 3
      %s43 = sadd.s32 %s42, %s33
      %p44 = scmp.lt.s32.totalorder %s43, 4
      %s45 = scalar_select %p44, %s43, 4
      %s46 = ssub.s32 %s41, %s45
      %p47 = scmp.eq.s32.totalorder %s46, 0
      %s49 = sadd.s32 %s48, 1
      %s50 = scalar_select %p47, %s48, %s49
      %p53 = pneg %p47
      %p54 = scmp.eq.s32.totalorder %s18, 5
      %p55 = por %p53, %p54
      %p56 = scmp.ne.s32.totalorder %s48, %s51
      %p57 = scmp.eq.s32.totalorder %s18, 0
      %p58 = por %p56, %p57
      %p59 = scmp.ne.s32.totalorder %s48, %s51
      %p60 = scmp.eq.s32.totalorder %s23, 5
      %p61 = por %p59, %p60
      %p62 = scmp.ne.s32.totalorder %s51, %s52
      %p63 = scmp.eq.s32.totalorder %s23, 0
      %p64 = por %p62, %p63
      %p65 = scmp.ne.s32.totalorder %s51, %s52
      %p66 = scmp.eq.s32.totalorder %s24, 5
      %p67 = por %p65, %p66
      %p69 = scmp.ne.s32.totalorder %s52, %s68
      %p70 = scmp.eq.s32.totalorder %s24, 0
      %p71 = por %p69, %p70
      %s72 = smul.u32 %s25, 3
      %s73 = sadd.s32 %s72, %s26
      %p74 = scmp.lt.s32.totalorder %s73, 4
      %s75 = scalar_select %p74, %s73, 4
      %s76 = smul.u32 %s37, 3
      %s77 = sadd.s32 %s76, %s33
      %p78 = scmp.lt.s32.totalorder %s77, 4
      %s79 = scalar_select %p78, %s77, 4
      %s80 = ssub.s32 %s75, %s79
      %p81 = scmp.eq.s32.totalorder %s80, 0
      %s83 = sadd.s32 %s82, 1
      %s84 = scalar_select %p81, %s82, %s83
      %p87 = pneg %p81
      %p88 = scmp.eq.s32.totalorder %s18, 5
      %p89 = por %p87, %p88
      %p90 = scmp.ne.s32.totalorder %s82, %s85
      %p91 = scmp.eq.s32.totalorder %s18, 0
      %p92 = por %p90, %p91
      %p93 = scmp.ne.s32.totalorder %s82, %s85
      %p94 = scmp.eq.s32.totalorder %s23, 5
      %p95 = por %p93, %p94
      %p96 = scmp.ne.s32.totalorder %s85, %s86
      %p97 = scmp.eq.s32.totalorder %s23, 0
      %p98 = por %p96, %p97
      %p99 = scmp.ne.s32.totalorder %s85, %s86
      %p100 = scmp.eq.s32.totalorder %s24, 5
      %p101 = por %p99, %p100
      %p103 = scmp.ne.s32.totalorder %s86, %s102
      %p104 = scmp.eq.s32.totalorder %s24, 0
      %p105 = por %p103, %p104
      %s106 = smul.u32 %s25, 3
      %s107 = sadd.s32 %s106, %s26
      %p108 = scmp.lt.s32.totalorder %s107, 4
      %s109 = scalar_select %p108, %s107, 4
      %s110 = smul.u32 %s37, 3
      %s111 = sadd.s32 %s110, %s33
      %p112 = scmp.lt.s32.totalorder %s111, 4
      %s113 = scalar_select %p112, %s111, 4
      %s114 = ssub.s32 %s109, %s113
      %p115 = scmp.eq.s32.totalorder %s114, 0
      %s117 = sadd.s32 %s116, 1
      %s118 = scalar_select %p115, %s116, %s117
      %p121 = pneg %p115
      %p122 = scmp.eq.s32.totalorder %s18, 5
      %p123 = por %p121, %p122
      %p124 = scmp.ne.s32.totalorder %s116, %s119
      %p125 = scmp.eq.s32.totalorder %s18, 0
      %p126 = por %p124, %p125
      %p127 = scmp.ne.s32.totalorder %s116, %s119
      %p128 = scmp.eq.s32.totalorder %s23, 5
      %p129 = por %p127, %p128
      %p130 = scmp.ne.s32.totalorder %s119, %s120
      %p131 = scmp.eq.s32.totalorder %s23, 0
      %p132 = por %p130, %p131
      %p133 = scmp.ne.s32.totalorder %s119, %s120
      %p134 = scmp.eq.s32.totalorder %s24, 5
      %p135 = por %p133, %p134
      %p137 = scmp.ne.s32.totalorder %s120, %s136
      %p138 = scmp.eq.s32.totalorder %s24, 0
      %p139 = por %p137, %p138
      %s140 = ssub.s32 %s25, %s37
      %p141 = scmp.eq.s32.totalorder %s140, 0
      %s143 = sadd.s32 %s142, 1
      %s144 = scalar_select %p141, %s142, %s143
      %p147 = pneg %p141
      %p148 = scmp.eq.s32.totalorder %s18, 5
      %p149 = por %p147, %p148
      %p150 = scmp.ne.s32.totalorder %s142, %s145
      %p151 = scmp.eq.s32.totalorder %s18, 0
      %p152 = por %p150, %p151
      %p153 = scmp.ne.s32.totalorder %s142, %s145
      %p154 = scmp.eq.s32.totalorder %s23, 5
      %p155 = por %p153, %p154
      %p156 = scmp.ne.s32.totalorder %s145, %s146
      %p157 = scmp.eq.s32.totalorder %s23, 0
      %p158 = por %p156, %p157
      %p159 = scmp.ne.s32.totalorder %s145, %s146
      %p160 = scmp.eq.s32.totalorder %s24, 5
      %p161 = por %p159, %p160
      %p163 = scmp.ne.s32.totalorder %s146, %s162
      %p164 = scmp.eq.s32.totalorder %s24, 0
      %p165 = por %p163, %p164
      %p166 = scmp.le.s32.totalorder 1, %s18
      %p167 = scmp.lt.s32.totalorder %s18, 7
      %p168 = pnand %p166, %p167
      %p169 = pneg %p168
      // Predicated region
      $region9: #{tpu_custom_call.1} parent=5 // pred_check
        _
      $region10: #{tpu_custom_call.1} parent=5 // pred_check_branch
        %171 = sbr.rel (%p168) target = $region12
      $region11: #{tpu_custom_call.1} parent=5 // pred_region
        %s172 = ssub.s32 %s18, 1
      $region12: #{tpu_custom_call.1} parent=5 // pred_fallthru
        _
      %p173 = scmp.lt.s32.totalorder %s18, 6
      // Predicated region
      $region13: #{tpu_custom_call.1} parent=5 // pred_check
        %p174 = pneg %p173
      $region14: #{tpu_custom_call.1} parent=5 // pred_check_branch
        %176 = sbr.rel (%p174) target = $region16
      $region15: #{tpu_custom_call.1} parent=5 // pred_region
        // Predicated region
        $region17: #{tpu_custom_call.1} parent=15 // pred_check
          %p177 = pneg %p58
        $region18: #{tpu_custom_call.1} parent=15 // pred_check_branch
          %179 = sbr.rel (%p177) target = $region20
        $region19: #{tpu_custom_call.1} parent=15 // pred_region
          %s180 = sand.u32 %s48, 1
          %s181 = scalar_lea.sflag [#allocation3], %s180
          %s182 = sand.u32 %s48, 1
          %s183 = smul.addr %s182, 8
          %s184 = scalar_lea.vmem [#allocation2], %s183
          %s185 = smul.u32 %s25, 3
          %s186 = sadd.s32 %s185, %s26
          %p187 = scmp.lt.s32.totalorder %s186, 4
          %s188 = scalar_select %p187, %s186, 4
          %s190 = ssub.s32 128, 128
          %191 = vsyncadd %s181, %s190
          %s192 = smul.addr %s188, 128
          %s193 = scalar_lea.hbm %s0, %s192
          %s195 = sshll.u32 %s184, 4
          %s196 = int_to_ptr.vmem [resolvable:$true] %s195
          %198 = dma.hbm_to_vmem [thread:$0]  %s193, 128, %s196, %s181
        $region20: #{tpu_custom_call.1} parent=15 // pred_fallthru
          _
        // Predicated region
        $region21: #{tpu_custom_call.1} parent=15 // pred_check
          %p199 = pneg %p92
        $region22: #{tpu_custom_call.1} parent=15 // pred_check_branch
          %201 = sbr.rel (%p199) target = $region24
        $region23: #{tpu_custom_call.1} parent=15 // pred_region
          %s202 = sand.u32 %s18, 1
          %s203 = scalar_lea.sflag [#allocation6], %s202
          %s204 = sand.u32 %s82, 1
          %s205 = smul.addr %s204, 8
          %s206 = scalar_lea.vmem [#allocation5], %s205
          %s207 = smul.u32 %s25, 3
          %s208 = sadd.s32 %s207, %s26
          %p209 = scmp.lt.s32.totalorder %s208, 4
          %s210 = scalar_select %p209, %s208, 4
          %s212 = ssub.s32 128, 128
          %213 = vsyncadd %s203, %s212
          %s214 = smul.addr %s210, 128
          %s215 = scalar_lea.hbm %s1, %s214
          %s217 = sshll.u32 %s206, 4
          %s218 = int_to_ptr.vmem [resolvable:$true] %s217
          %220 = dma.hbm_to_vmem [thread:$0]  %s215, 128, %s218, %s203
        $region24: #{tpu_custom_call.1} parent=15 // pred_fallthru
          _
        // Predicated region
        $region25: #{tpu_custom_call.1} parent=15 // pred_check
          %p221 = pneg %p126
        $region26: #{tpu_custom_call.1} parent=15 // pred_check_branch
          %223 = sbr.rel (%p221) target = $region28
        $region27: #{tpu_custom_call.1} parent=15 // pred_region
          %s224 = sand.u32 %s18, 1
          %s225 = scalar_lea.sflag [#allocation6], %s224
          %s226 = sand.u32 %s116, 1
          %s227 = smul.addr %s226, 8
          %s228 = scalar_lea.vmem [#allocation7], %s227
          %s229 = smul.u32 %s25, 3
          %s230 = sadd.s32 %s229, %s26
          %p231 = scmp.lt.s32.totalorder %s230, 4
          %s232 = scalar_select %p231, %s230, 4
          %s234 = ssub.s32 128, 128
          %235 = vsyncadd %s225, %s234
          %s236 = smul.addr %s232, 128
          %s237 = scalar_lea.hbm %s2, %s236
          %s239 = sshll.u32 %s228, 4
          %s240 = int_to_ptr.vmem [resolvable:$true] %s239
          %242 = dma.hbm_to_vmem [thread:$0]  %s237, 128, %s240, %s225
        $region28: #{tpu_custom_call.1} parent=15 // pred_fallthru
          _
      $region16: #{tpu_custom_call.1} parent=5 // pred_fallthru
        _
      %p243 = scmp.le.s32.totalorder 1, %s18
      %p244 = scmp.lt.s32.totalorder %s18, 7
      %p245 = pnand %p243, %p244
      %p246 = pneg %p245
      // Predicated region
      $region29: #{tpu_custom_call.1} parent=5 // pred_check
        _
      $region30: #{tpu_custom_call.1} parent=5 // pred_check_branch
        %248 = sbr.rel (%p245) target = $region32
      $region31: #{tpu_custom_call.1} parent=5 // pred_region
        %s249 = ssub.s32 %s18, 1
        %s250 = sand.u32 %s51, 1
        %s251 = scalar_lea.sflag [#allocation3], %s250
        %s252 = sand.u32 %s51, 1
        %s253 = smul.addr %s252, 8
        %s254 = scalar_lea.vmem [#allocation2], %s253
        // Predicated region
        $region33: #{tpu_custom_call.1} parent=31 // pred_check
          %p255 = pneg %p64
        $region34: #{tpu_custom_call.1} parent=31 // pred_check_branch
          %257 = sbr.rel (%p255) target = $region36
        $region35: #{tpu_custom_call.1} parent=31 // pred_region
          %258 = dma.done %s251, 128
        $region36: #{tpu_custom_call.1} parent=31 // pred_fallthru
          _
        %s259 = sand.u32 %s23, 1
        %s260 = scalar_lea.sflag [#allocation6], %s259
        %s261 = sand.u32 %s85, 1
        %s262 = smul.addr %s261, 8
        %s263 = scalar_lea.vmem [#allocation5], %s262
        // Predicated region
        $region37: #{tpu_custom_call.1} parent=31 // pred_check
          %p264 = pneg %p98
        $region38: #{tpu_custom_call.1} parent=31 // pred_check_branch
          %266 = sbr.rel (%p264) target = $region40
        $region39: #{tpu_custom_call.1} parent=31 // pred_region
          %267 = dma.done %s260, 128
        $region40: #{tpu_custom_call.1} parent=31 // pred_fallthru
          _
        %s268 = sand.u32 %s23, 1
        %s269 = scalar_lea.sflag [#allocation6], %s268
        %s270 = sand.u32 %s119, 1
        %s271 = smul.addr %s270, 8
        %s272 = scalar_lea.vmem [#allocation7], %s271
        // Predicated region
        $region41: #{tpu_custom_call.1} parent=31 // pred_check
          %p273 = pneg %p132
        $region42: #{tpu_custom_call.1} parent=31 // pred_check_branch
          %275 = sbr.rel (%p273) target = $region44
        $region43: #{tpu_custom_call.1} parent=31 // pred_region
          %276 = dma.done %s269, 128
        $region44: #{tpu_custom_call.1} parent=31 // pred_fallthru
          _
        %s277 = sand.u32 %s51, 1
        %s278 = scalar_lea.sflag [#allocation3], %s277
        %s279 = sand.u32 %s51, 1
        %s280 = smul.addr %s279, 8
        %s281 = scalar_lea.vmem [#allocation2], %s280
        %p282 = pneg %p64
        %p283 = pneg %p61
        %s284 = sand.u32 %s23, 1
        %s285 = scalar_lea.sflag [#allocation6], %s284
        %s286 = sand.u32 %s85, 1
        %s287 = smul.addr %s286, 8
        %s288 = scalar_lea.vmem [#allocation5], %s287
        %p289 = pneg %p98
        %p290 = pneg %p95
        %s291 = sand.u32 %s23, 1
        %s292 = scalar_lea.sflag [#allocation6], %s291
        %s293 = sand.u32 %s119, 1
        %s294 = smul.addr %s293, 8
        %s295 = scalar_lea.vmem [#allocation7], %s294
        %p296 = pneg %p132
        %p297 = pneg %p129
        %p298 = pneg %p158
        %p299 = pneg %p155
        %s300 = sand.u32 %s145, 1
        %s301 = scalar_lea.sflag [#allocation4], %s300
        %s302 = sand.u32 %s145, 1
        %s303 = smul.addr %s302, 8
        %s304 = scalar_lea.vmem [#allocation8], %s303
        %s305 = smul.u32 %s27, 3
        %s306 = sadd.s32 %s305, %s28
        %p307 = scmp.lt.s32.totalorder %s306, 4
        %s308 = scalar_select %p307, %s306, 4
        %s309 = smul.u32 %s27, 3
        %s310 = sadd.s32 %s309, %s28
        %p311 = scmp.lt.s32.totalorder %s310, 4
        %s312 = scalar_select %p311, %s310, 4
        %s313 = smul.u32 %s27, 3
        %s314 = sadd.s32 %s313, %s28
        %p315 = scmp.lt.s32.totalorder %s314, 4
        %s316 = scalar_select %p315, %s314, 4
        %s317 = smul.u32 %s27, 3
        %s318 = sadd.s32 %s317, %s28
        %p319 = scmp.eq.s32.totalorder %s28, 0
        // Predicated region
        $region45: #{tpu_custom_call.1} parent=31 // pred_check
          %p320 = pneg %p319
        $region46: #{tpu_custom_call.1} parent=31 // pred_check_branch
          %322 = sbr.rel (%p320) target = $region48
        $region47: #{tpu_custom_call.1} parent=31 // pred_region
          %323 = vst [vmem:[%s304] sm:$0xff] 0.0
        $region48: #{tpu_custom_call.1} parent=31 // pred_fallthru
          _
        %p324 = scmp.lt.s32.totalorder %s318, 4
        // Predicated region
        $region49: #{tpu_custom_call.1} parent=31 // pred_check
          %p325 = pneg %p324
        $region50: #{tpu_custom_call.1} parent=31 // pred_check_branch
          %327 = sbr.rel (%p325) target = $region52
        $region51: #{tpu_custom_call.1} parent=31 // pred_region
          %v328 = vld [vmem:[%s254] sm:$0xff]
          %v329 = vld [vmem:[%s263] sm:$0xff]
          %v330 = vld [vmem:[%s272] sm:$0xff]
          %v331 = vadd.f32 %v328, %v330
          %v332 = vmul.f32 %v329, %v331
          %v333 = vadd.f32 %v332, 0.0
          %v334 = vld [vmem:[%s304] sm:$0xff]
          %v335 = vadd.f32 %v334, %v333
          %336 = vst [vmem:[%s304] sm:$0xff] %v335
        $region52: #{tpu_custom_call.1} parent=31 // pred_fallthru
          _
        %p337 = scmp.eq.s32.totalorder %s318, 4
        // Predicated region
        $region53: #{tpu_custom_call.1} parent=31 // pred_check
          %p338 = pneg %p337
        $region54: #{tpu_custom_call.1} parent=31 // pred_check_branch
          %340 = sbr.rel (%p338) target = $region56
        $region55: #{tpu_custom_call.1} parent=31 // pred_region
          %v341 = vld [vmem:[%s254] sm:$0xff]
          %v342 = vld [vmem:[%s263] sm:$0xff]
          %v343 = vld [vmem:[%s272] sm:$0xff]
          %v344 = vadd.f32 %v341, %v343
          %v345 = vmul.f32 %v342, %v344
          %s346 = smul.u32 %s318, 8
          %v347 = vlaneseq
          %v348 = vshrl.u32 %v347, 7
          %v349 = vstv %s346
          %v350 = vadd.s32 %v349, %v348
          %vm351 = vcmp.lt.s32.totalorder %v350, 37
          %v352 = vsel %vm351, %v345, 0.0
          %v353 = vadd.f32 %v352, 0.0
          %v354 = vld [vmem:[%s304] sm:$0xff]
          %v355 = vadd.f32 %v354, %v353
          %356 = vst [vmem:[%s304] sm:$0xff] %v355
        $region56: #{tpu_custom_call.1} parent=31 // pred_fallthru
          _
        %s357 = sand.u32 %s145, 1
        %s358 = scalar_lea.sflag [#allocation4], %s357
        %s359 = sand.u32 %s145, 1
        %s360 = smul.addr %s359, 8
        %s361 = scalar_lea.vmem [#allocation8], %s360
        // Predicated region
        $region57: #{tpu_custom_call.1} parent=31 // pred_check
          %p362 = pneg %p155
        $region58: #{tpu_custom_call.1} parent=31 // pred_check_branch
          %364 = sbr.rel (%p362) target = $region60
        $region59: #{tpu_custom_call.1} parent=31 // pred_region
          %s366 = ssub.s32 128, 128
          %367 = vsyncadd %s358, %s366
          %s368 = smul.addr %s27, 128
          %s369 = scalar_lea.hbm %s3, %s368
          %s371 = sshll.u32 %s361, 4
          %s372 = int_to_ptr.vmem [resolvable:$true] %s371
          %374 = dma.vmem_to_hbm [thread:$0]  %s372, 128, %s369, %s358
        $region60: #{tpu_custom_call.1} parent=31 // pred_fallthru
          _
      $region32: #{tpu_custom_call.1} parent=5 // pred_fallthru
        _
      %p375 = scmp.le.s32.totalorder 2, %s18
      // Predicated region
      $region61: #{tpu_custom_call.1} parent=5 // pred_check
        %p376 = pneg %p375
      $region62: #{tpu_custom_call.1} parent=5 // pred_check_branch
        %378 = sbr.rel (%p376) target = $region64
      $region63: #{tpu_custom_call.1} parent=5 // pred_region
        %s379 = ssub.s32 %s18, 2
        // Predicated region
        $region65: #{tpu_custom_call.1} parent=63 // pred_check
          %p380 = pneg %p161
        $region66: #{tpu_custom_call.1} parent=63 // pred_check_branch
          %382 = sbr.rel (%p380) target = $region68
        $region67: #{tpu_custom_call.1} parent=63 // pred_region
          %s383 = sand.u32 %s146, 1
          %s384 = scalar_lea.sflag [#allocation4], %s383
          %s385 = sand.u32 %s146, 1
          %s386 = smul.addr %s385, 8
          %s387 = scalar_lea.vmem [#allocation8], %s386
          %388 = dma.done %s384, 128
        $region68: #{tpu_custom_call.1} parent=63 // pred_fallthru
          _
      $region64: #{tpu_custom_call.1} parent=5 // pred_fallthru
        _
    $region6: #{tpu_custom_call.1} parent=1 // loop_footer
      %s22 = sadd.s32 1, %s18
    $region7: #{tpu_custom_call.1} parent=1 // loop_footer_branch
      %17 = sbr.rel target = $region3
    $region8: #{tpu_custom_call.1} parent=1 // loop_exit
      _
    %389 = vsyncpa [#allocation3], 1
    %s390 = scalar_lea.sflag [#allocation3], 1
    %391 = vsyncpa %s390, 1
    %392 = vsyncpa [#allocation6], 1
    %s393 = scalar_lea.sflag [#allocation6], 1
    %394 = vsyncpa %s393, 1
    %395 = vsyncpa [#allocation4], 1
    %s396 = scalar_lea.sflag [#allocation4], 1
    %397 = vsyncpa %s396, 1

</llo_original>
